<compile_context>
chip_gen: v7x
topology: tpu7x:2x2x1
jax: 0.10.0
libtpu: 0.0.40
codegen_flags: <defaults>
</compile_context>

<pallas_src>
import jax
import jax.numpy as jnp
from jax.experimental import pallas as pl
from jax.experimental.pallas import tpu as pltpu


LANE = 512                     # lane width: multiple of 128 -> unmasked vst
TM_MAX = 2048                  # rows per block: (2048, 512) f32 = 4 MiB
SMALL_INPUT_THRESHOLD = 1 << 20  # below this, plain XLA elementwise is faster


def _binarize_kernel(x_ref, o_ref):
    # mask = 1.0 where x < 0 else 0.0; direct bool->dtype cast, no broadcast
    # constants materialized.
    o_ref[...] = (x_ref[...] < 0).astype(o_ref.dtype)


def _round_up(n: int, m: int) -> int:
    return ((n + m - 1) // m) * m


def _sublane_multiple(dtype) -> int:
    # Packed-tile granularity: 8 rows for 4-byte, 16 for 2-byte, 32 for 1-byte.
    itemsize = jnp.dtype(dtype).itemsize
    return max(8, 32 // itemsize)


@jax.jit
def binarize_pallas(levelset: jax.Array) -> jax.Array:
    """Elementwise binarization via Pallas: 1.0 where levelset < 0, else 0.0."""
    orig_shape = levelset.shape
    orig_dtype = levelset.dtype
    total = int(levelset.size)

    flat = levelset.reshape(-1)

    sub = _sublane_multiple(orig_dtype)
    rows_needed = pl.cdiv(total, LANE)
    # Only pad up to the sublane multiple (a few rows at most); partial last
    # grid blocks are handled by Pallas (reads padded, writes clipped).
    rows = _round_up(max(rows_needed, 1), sub)
    padded_len = rows * LANE
    if padded_len != total:
        flat = jnp.pad(flat, (0, padded_len - total))
    x2d = flat.reshape(rows, LANE)

    tm = min(TM_MAX, _round_up(max(rows_needed, 1), sub))
    grid = (pl.cdiv(rows, tm),)

    out = pl.pallas_call(
        _binarize_kernel,
        out_shape=jax.ShapeDtypeStruct((rows, LANE), orig_dtype),
        grid=grid,
        in_specs=[pl.BlockSpec((tm, LANE), lambda i: (i, 0))],
        out_specs=pl.BlockSpec((tm, LANE), lambda i: (i, 0)),
        compiler_params=pltpu.CompilerParams(
            # Independent elementwise tiles -> shard across both TCs on v7x.
            dimension_semantics=("parallel",),
            # 4 MiB blocks * (in + out) * double-buffer ~= 16 MiB; raise the
            # scoped VMEM so the same tile is legal on v5e (16 MiB default).
            vmem_limit_bytes=32 << 20,
        ),
    )(x2d)

    # Trim padding and restore the original shape (fuses under jit).
    return out.reshape(-1)[:total].reshape(orig_shape)


@jax.jit
def _binarize_small(levelset: jax.Array) -> jax.Array:
    return (levelset < 0).astype(levelset.dtype)


def binarize(levelset: jax.Array) -> jax.Array:
    """Public entry point: small arrays go to a fused XLA op, large to Pallas."""
    if levelset.size < SMALL_INPUT_THRESHOLD:
        return _binarize_small(levelset)
    return binarize_pallas(levelset)


if __name__ == "__main__":
    key = jax.random.PRNGKey(0)
    # Small NCHW level-set image: (2, 4, 16, 16)
    x = jax.random.normal(key, (2, 4, 16, 16), dtype=jnp.float32)

    # Force the Pallas kernel path once (the public wrapper would take the
    # small-input fallback at this size).
    y_kernel = binarize_pallas(x)
    jax.block_until_ready(y_kernel)

    # Public API path (fallback for this small size).
    y_api = binarize(x)
    jax.block_until_ready(y_api)

    # Reference check (plain JAX, matches PyTorch forward semantics).
    y_ref = jnp.where(x < 0, 1.0, 0.0).astype(x.dtype)
    assert y_kernel.shape == x.shape and y_kernel.dtype == x.dtype
    assert bool(jnp.all(y_kernel == y_ref))
    assert bool(jnp.all(y_api == y_ref))

    print("KERNEL_OK")
</pallas_src>

<mosaic_0001>
module attributes {stable_mosaic.version = 11 : i64} {
  func.func @_binarize_kernel(%arg0: i32, %arg1: memref<8x512xf32, #tpu.memory_space<vmem>>, %arg2: memref<8x512xf32, #tpu.memory_space<vmem>>) attributes {dimension_semantics = [#tpu.dimension_semantics<parallel>], iteration_bounds = array<i64: 1>, scalar_prefetch = 0 : i64, scratch_operands = 0 : i64, tpu.core_type = #tpu.core_type<tc>, window_params = [{transform_indices = @transform_0, window_bounds = array<i64: 8, 512>}, {transform_indices = @transform_1, window_bounds = array<i64: 8, 512>}]} {
    %c0 = arith.constant 0 : index
    %c0_0 = arith.constant 0 : index
    %0 = vector.load %arg1[%c0, %c0_0] : memref<8x512xf32, #tpu.memory_space<vmem>>, vector<8x512xf32>
    %cst = arith.constant 0.000000e+00 : f32
    %1 = vector.broadcast %cst : f32 to vector<8x512xf32>
    %2 = arith.cmpf olt, %0, %1 : vector<8x512xf32>
    %3 = arith.extui %2 : vector<8x512xi1> to vector<8x512xi32>
    %4 = arith.sitofp %3 : vector<8x512xi32> to vector<8x512xf32>
    %c0_1 = arith.constant 0 : index
    %c0_2 = arith.constant 0 : index
    %5 = vector.load %arg2[%c0_1, %c0_2] : memref<8x512xf32, #tpu.memory_space<vmem>>, vector<8x512xf32>
    tpu.vector_store %arg2[%c0_1, %c0_2], %4 {strides = array<i32>} : memref<8x512xf32, #tpu.memory_space<vmem>>, vector<8x512xf32>,
    return
  }
  func.func @transform_0(%arg0: i32) -> (i32, i32) {
    %c0_i32 = arith.constant 0 : i32
    %c0_i32_0 = arith.constant 0 : i32
    return %arg0, %c0_i32 : i32, i32
  }
  func.func @transform_1(%arg0: i32) -> (i32, i32) {
    %c0_i32 = arith.constant 0 : i32
    %c0_i32_0 = arith.constant 0 : i32
    return %arg0, %c0_i32 : i32, i32
  }
}

</mosaic_0001>

<llo_original>
// kernel: binarize_pallas.1
$region0: #{binarize_pallas.1}
  #allocation0 [shape = 'u32[]', space=smem, size = 0x4, offset = 0x4, fixed_abs, tag = 'smem constant byte address 0x4 - core index']
  #allocation1 [shape = 'u32[144,128]{1,0:T(1,128)}', space=vmem, size = 0x12000, scoped, tag = 'internal scratch']
  %s0 = inlined_call_operand.vmem [shape: f32[8,512], index: 0, kind: input, shape index: {}]
  %s1 = inlined_call_operand.vmem [shape: f32[8,512], index: 1, kind: output, shape index: {}]
  %s2 = sld [smem:[#allocation0]]
  $region14: #{binarize_pallas.1} parent=0
    _
  %s4 = ssub.s32 1, %s2
  %s5 = scalar_select 0, %s4, %s2
  // Predicated region
  $region2: #{binarize_pallas.1} parent=0 // pred_check
    _
  $region3: #{binarize_pallas.1} parent=0 // pred_check_branch
    %7 = sbr.rel (0) target = $region5
  $region4: #{binarize_pallas.1} parent=0 // pred_region
    _
  $region5: #{binarize_pallas.1} parent=0 // pred_fallthru
    _
  %v8 = vld [vmem:[%s0] sm:$0xff]
  %v9 = vld [vmem:[%s0 + $0x8] sm:$0xff]
  %v10 = vld [vmem:[%s0 + $0x10] sm:$0xff]
  %v11 = vld [vmem:[%s0 + $0x18] sm:$0xff]
  %vm12 = vcmp.lt.f32.partialorder %v8, 0.0
  %vm13 = vcmp.lt.f32.partialorder %v9, 0.0
  %vm14 = vcmp.lt.f32.partialorder %v10, 0.0
  %vm15 = vcmp.lt.f32.partialorder %v11, 0.0
  %v16 = vsel %vm12, 1, 0
  %v17 = vsel %vm13, 1, 0
  %v18 = vsel %vm14, 1, 0
  %v19 = vsel %vm15, 1, 0
  %v20 = vcvt.s32.f32 %v16
  %v21 = vcvt.s32.f32 %v17
  %v22 = vcvt.s32.f32 %v18
  %v23 = vcvt.s32.f32 %v19
  %24 = vst [vmem:[%s1] sm:$0xff] %v20
  %25 = vst [vmem:[%s1 + $0x8] sm:$0xff] %v21
  %26 = vst [vmem:[%s1 + $0x10] sm:$0xff] %v22
  %27 = vst [vmem:[%s1 + $0x18] sm:$0xff] %v23
  // Predicated region
  $region6: #{binarize_pallas.1} parent=0 // pred_check
    _
  $region7: #{binarize_pallas.1} parent=0 // pred_check_branch
    %29 = sbr.rel (0) target = $region9
  $region8: #{binarize_pallas.1} parent=0 // pred_region
    _
  $region9: #{binarize_pallas.1} parent=0 // pred_fallthru
    _
  // Predicated region
  $region10: #{binarize_pallas.1} parent=0 // pred_check
    _
  $region11: #{binarize_pallas.1} parent=0 // pred_check_branch
    %31 = sbr.rel (0) target = $region13
  $region12: #{binarize_pallas.1} parent=0 // pred_region
    _
  $region13: #{binarize_pallas.1} parent=0 // pred_fallthru
    _

</llo_original>
